<compile_context>
chip_gen: v7x
topology: tpu7x:2x2x1
jax: 0.10.0
libtpu: 0.0.40
codegen_flags: <defaults>
</compile_context>

<pallas_src>
import jax
import jax.numpy as jnp
from jax.experimental import pallas as pl
from jax.experimental.pallas import tpu as pltpu

# Module hyper-parameters (from ConvTrans2dBlock.__init__ defaults)
IN_DIMS = 32
OUT_DIMS = 16
KH, KW = 3, 3
STRIDE = (1, 2)
PADDING = (1, 0)
OUT_PADDING = (0, 0)
EPS = 1e-5  # nn.InstanceNorm2d default eps, affine=False, no running stats


def _fused_kernel(xs_ref, w_ref, b_ref, o_ref):
    # xs_ref: (1, K, S)    im2col of one sample (K = KH*KW*Cin, S = Ho*Wo)
    # w_ref : (Cout, K)    flipped ConvTranspose2d weight, matmul-ready
    # b_ref : (Cout, 1)
    # o_ref : (1, Cout, S) lane-dense output (== NCHW with spatial flattened)
    acc = jnp.dot(w_ref[...], xs_ref[0],
                  preferred_element_type=jnp.float32) + b_ref[...]
    # ELU (alpha = 1.0)
    y = jnp.where(acc > 0.0, acc, jnp.exp(jnp.minimum(acc, 0.0)) - 1.0)
    # InstanceNorm2d (no affine): per-channel stats over the flattened spatial axis.
    mean = jnp.mean(y, axis=1, keepdims=True)
    var = jnp.mean(jnp.square(y - mean), axis=1, keepdims=True)  # biased variance
    o_ref[0, :, :] = (y - mean) * jax.lax.rsqrt(var + EPS)


def conv_trans2d_block(x_nchw, weight, bias):
    """Forward pass of ConvTrans2dBlock.

    x_nchw : (N, Cin, H, W) float32
    weight : (Cin, Cout, KH, KW) float32  (PyTorch ConvTranspose2d layout)
    bias   : (Cout,) float32
    returns: (N, Cout, Ho, Wo) float32
    """
    n, cin, h, w = x_nchw.shape
    cout = weight.shape[1]
    sh, sw = STRIDE
    ph, pw = PADDING
    oph, opw = OUT_PADDING
    ho = (h - 1) * sh - 2 * ph + KH + oph
    wo = (w - 1) * sw - 2 * pw + KW + opw
    s = ho * wo
    k = KH * KW * cin

    x = x_nchw.astype(jnp.float32)

    # lhs-dilate (zero insert) by the transposed-conv stride, NCHW layout.
    hd = (h - 1) * sh + 1
    wd = (w - 1) * sw + 1
    x_up = jnp.zeros((n, cin, hd, wd), jnp.float32).at[:, :, ::sh, ::sw].set(x)

    # Pad by (K - 1 - p) per side; output_padding adds extra zeros on the high side.
    xp = jnp.pad(x_up, ((0, 0), (0, 0),
                        (KH - 1 - ph, KH - 1 - ph + oph),
                        (KW - 1 - pw, KW - 1 - pw + opw)))

    # im2col: xs[n, (kh*KW+kw)*Cin + ci, oh*Wo + ow] = xp[n, ci, oh+kh, ow+kw]
    taps = [xp[:, :, kh:kh + ho, kw:kw + wo]
            for kh in range(KH) for kw in range(KW)]          # each (N, Cin, Ho, Wo)
    xs = jnp.stack(taps, axis=1).reshape(n, k, s)

    # Matmul-ready weight: wmat[co, (kh*KW+kw)*Cin + ci] = W[ci, co, KH-1-kh, KW-1-kw]
    wflip = weight[:, :, ::-1, ::-1].astype(jnp.float32)       # (Cin, Cout, KH, KW)
    wmat = jnp.transpose(wflip, (1, 2, 3, 0)).reshape(cout, k)
    b2 = bias.reshape(cout, 1).astype(jnp.float32)

    out = pl.pallas_call(
        _fused_kernel,
        out_shape=jax.ShapeDtypeStruct((n, cout, s), jnp.float32),
        grid_spec=pltpu.PrefetchScalarGridSpec(
            num_scalar_prefetch=0,
            grid=(n,),
            in_specs=[
                pl.BlockSpec((1, k, s), lambda b: (b, 0, 0)),
                pl.BlockSpec((cout, k), lambda b: (0, 0)),
                pl.BlockSpec((cout, 1), lambda b: (0, 0)),
            ],
            out_specs=pl.BlockSpec((1, cout, s), lambda b: (b, 0, 0)),
        ),
        compiler_params=pltpu.CompilerParams(
            dimension_semantics=("parallel",)),
    )(xs, wmat, b2)

    # (N, Cout, Ho*Wo) -> (N, Cout, Ho, Wo): pure metadata reshape, no transpose.
    return out.reshape(n, cout, ho, wo)


def _reference(x, weight, bias):
    """Pure-JAX reference of the PyTorch forward (for a correctness assert)."""
    ph, pw = PADDING
    oph, opw = OUT_PADDING
    wt = jnp.transpose(weight[:, :, ::-1, ::-1], (1, 0, 2, 3))  # (Cout, Cin, KH, KW)
    y = jax.lax.conv_general_dilated(
        x.astype(jnp.float32), wt.astype(jnp.float32),
        window_strides=(1, 1),
        padding=((KH - 1 - ph, KH - 1 - ph + oph),
                 (KW - 1 - pw, KW - 1 - pw + opw)),
        lhs_dilation=STRIDE,
        dimension_numbers=("NCHW", "OIHW", "NCHW"))
    y = y + bias[None, :, None, None]
    y = jnp.where(y > 0.0, y, jnp.exp(jnp.minimum(y, 0.0)) - 1.0)
    m = jnp.mean(y, axis=(2, 3), keepdims=True)
    v = jnp.mean((y - m) ** 2, axis=(2, 3), keepdims=True)
    return (y - m) * jax.lax.rsqrt(v + EPS)


if __name__ == "__main__":
    key = jax.random.PRNGKey(0)
    kx, kw_, kb = jax.random.split(key, 3)

    N, H, W = 2, 8, 8
    x = jax.random.normal(kx, (N, IN_DIMS, H, W), jnp.float32)

    # Deterministic synthetic parameters (PyTorch ConvTranspose2d shapes):
    #   weight: (in_channels, out_channels, kH, kW), bias: (out_channels,)
    fan_in = IN_DIMS * KH * KW
    bound = 1.0 / (fan_in ** 0.5)
    weight = jax.random.uniform(kw_, (IN_DIMS, OUT_DIMS, KH, KW),
                                jnp.float32, -bound, bound)
    bias = jax.random.uniform(kb, (OUT_DIMS,), jnp.float32, -bound, bound)

    out = conv_trans2d_block(x, weight, bias)
    out = jax.block_until_ready(out)

    ho_expect = (H - 1) * STRIDE[0] - 2 * PADDING[0] + KH + OUT_PADDING[0]   # 8
    wo_expect = (W - 1) * STRIDE[1] - 2 * PADDING[1] + KW + OUT_PADDING[1]   # 17
    assert out.shape == (N, OUT_DIMS, ho_expect, wo_expect), out.shape
    assert bool(jnp.all(jnp.isfinite(out)))
    # Instance norm => per (sample, channel) spatial mean ~ 0
    assert float(jnp.max(jnp.abs(jnp.mean(out, axis=(2, 3))))) < 1e-4
    # Numerics match a pure-JAX implementation of the PyTorch forward.
    ref = jax.block_until_ready(_reference(x, weight, bias))
    assert float(jnp.max(jnp.abs(out - ref))) < 1e-3

    print("KERNEL_OK")
</pallas_src>

<mosaic_0001>
module attributes {stable_mosaic.version = 11 : i64} {
  func.func @_fused_kernel(%arg0: i32, %arg1: memref<1x288x136xf32, #tpu.memory_space<vmem>>, %arg2: memref<16x288xf32, #tpu.memory_space<vmem>>, %arg3: memref<16x1xf32, #tpu.memory_space<vmem>>, %arg4: memref<1x16x136xf32, #tpu.memory_space<vmem>>) attributes {dimension_semantics = [#tpu.dimension_semantics<parallel>], iteration_bounds = array<i64: 2>, scalar_prefetch = 0 : i64, scratch_operands = 0 : i64, tpu.core_type = #tpu.core_type<tc>, window_params = [{transform_indices = @transform_0, window_bounds = array<i64: 1, 288, 136>}, {pipeline_mode = #tpu.pipeline_mode<synchronous>, transform_indices = @transform_1, window_bounds = array<i64: 16, 288>}, {pipeline_mode = #tpu.pipeline_mode<synchronous>, transform_indices = @transform_2, window_bounds = array<i64: 16, 1>}, {transform_indices = @transform_3, window_bounds = array<i64: 1, 16, 136>}]} {
    %c0 = arith.constant 0 : index
    %c0_0 = arith.constant 0 : index
    %0 = vector.load %arg2[%c0, %c0_0] : memref<16x288xf32, #tpu.memory_space<vmem>>, vector<16x288xf32>
    %c0_1 = arith.constant 0 : index
    %c0_2 = arith.constant 0 : index
    %c0_3 = arith.constant 0 : index
    %1 = vector.load %arg1[%c0_1, %c0_2, %c0_3] : memref<1x288x136xf32, #tpu.memory_space<vmem>>, vector<1x288x136xf32>
    %2 = vector.shape_cast %1 : vector<1x288x136xf32> to vector<288x136xf32>
    %cst = arith.constant dense<0.000000e+00> : vector<16x136xf32>
    %3 = tpu.matmul %0, %2, %cst {dimension_numbers = #tpu.dot_dimension_numbers<[1], [0], [0], [1], [0, 0, 1, 1], [], []>} : vector<16x288xf32>, vector<288x136xf32>, vector<16x136xf32> -> vector<16x136xf32>
    %c0_4 = arith.constant 0 : index
    %c0_5 = arith.constant 0 : index
    %4 = vector.load %arg3[%c0_4, %c0_5] : memref<16x1xf32, #tpu.memory_space<vmem>>, vector<16x1xf32>
    %5 = vector.broadcast %4 : vector<16x1xf32> to vector<16x136xf32>
    %6 = arith.addf %3, %5 : vector<16x136xf32>
    %cst_6 = arith.constant 0.000000e+00 : f32
    %7 = vector.broadcast %cst_6 : f32 to vector<16x136xf32>
    %8 = arith.cmpf ogt, %6, %7 : vector<16x136xf32>
    %cst_7 = arith.constant 0.000000e+00 : f32
    %9 = vector.broadcast %cst_7 : f32 to vector<16x136xf32>
    %10 = arith.minimumf %6, %9 : vector<16x136xf32>
    %11 = math.exp %10 : vector<16x136xf32>
    %cst_8 = arith.constant 1.000000e+00 : f32
    %12 = vector.broadcast %cst_8 : f32 to vector<16x136xf32>
    %13 = arith.subf %11, %12 : vector<16x136xf32>
    %14 = arith.select %8, %6, %13 : vector<16x136xi1>, vector<16x136xf32>
    %cst_9 = arith.constant dense<0.000000e+00> : vector<16xf32>
    %15 = vector.multi_reduction <add>, %14, %cst_9 [1] : vector<16x136xf32> to vector<16xf32>
    %16 = vector.shape_cast %15 : vector<16xf32> to vector<16x1xf32>
    %cst_10 = arith.constant 1.360000e+02 : f32
    %17 = vector.broadcast %cst_10 : f32 to vector<16x1xf32>
    %18 = arith.divf %16, %17 : vector<16x1xf32>
    %19 = vector.broadcast %18 : vector<16x1xf32> to vector<16x136xf32>
    %20 = arith.subf %14, %19 : vector<16x136xf32>
    %21 = arith.mulf %20, %20 : vector<16x136xf32>
    %cst_11 = arith.constant dense<0.000000e+00> : vector<16xf32>
    %22 = vector.multi_reduction <add>, %21, %cst_11 [1] : vector<16x136xf32> to vector<16xf32>
    %23 = vector.shape_cast %22 : vector<16xf32> to vector<16x1xf32>
    %cst_12 = arith.constant 1.360000e+02 : f32
    %24 = vector.broadcast %cst_12 : f32 to vector<16x1xf32>
    %25 = arith.divf %23, %24 : vector<16x1xf32>
    %26 = vector.broadcast %18 : vector<16x1xf32> to vector<16x136xf32>
    %27 = arith.subf %14, %26 : vector<16x136xf32>
    %cst_13 = arith.constant 9.99999974E-6 : f32
    %28 = vector.broadcast %cst_13 : f32 to vector<16x1xf32>
    %29 = arith.addf %25, %28 : vector<16x1xf32>
    %30 = math.rsqrt %29 : vector<16x1xf32>
    %31 = vector.broadcast %30 : vector<16x1xf32> to vector<16x136xf32>
    %32 = arith.mulf %27, %31 : vector<16x136xf32>
    %c0_14 = arith.constant 0 : index
    %c0_15 = arith.constant 0 : index
    %c0_16 = arith.constant 0 : index
    %33 = vector.load %arg4[%c0_14, %c0_15, %c0_16] : memref<1x16x136xf32, #tpu.memory_space<vmem>>, vector<1x16x136xf32>
    %34 = vector.shape_cast %33 : vector<1x16x136xf32> to vector<16x136xf32>
    %35 = vector.shape_cast %32 : vector<16x136xf32> to vector<1x16x136xf32>
    tpu.vector_store %arg4[%c0_14, %c0_15, %c0_16], %35 {strides = array<i32>} : memref<1x16x136xf32, #tpu.memory_space<vmem>>, vector<1x16x136xf32>,
    return
  }
  func.func @transform_0(%arg0: i32) -> (i32, i32, i32) {
    %c0_i32 = arith.constant 0 : i32
    %c0_i32_0 = arith.constant 0 : i32
    %c0_i32_1 = arith.constant 0 : i32
    return %arg0, %c0_i32, %c0_i32_0 : i32, i32, i32
  }
  func.func @transform_1(%arg0: i32) -> (i32, i32) {
    %c0_i32 = arith.constant 0 : i32
    %c0_i32_0 = arith.constant 0 : i32
    %c0_i32_1 = arith.constant 0 : i32
    return %c0_i32, %c0_i32_0 : i32, i32
  }
  func.func @transform_2(%arg0: i32) -> (i32, i32) {
    %c0_i32 = arith.constant 0 : i32
    %c0_i32_0 = arith.constant 0 : i32
    %c0_i32_1 = arith.constant 0 : i32
    return %c0_i32, %c0_i32_0 : i32, i32
  }
  func.func @transform_3(%arg0: i32) -> (i32, i32, i32) {
    %c0_i32 = arith.constant 0 : i32
    %c0_i32_0 = arith.constant 0 : i32
    %c0_i32_1 = arith.constant 0 : i32
    return %arg0, %c0_i32, %c0_i32_0 : i32, i32, i32
  }
}

</mosaic_0001>

<llo_original>
// kernel: tpu_custom_call.1
$region0: #{tpu_custom_call.1}
  #allocation0 [shape = 'u32[]', space=smem, size = 0x4, offset = 0x4, fixed_abs, tag = 'smem constant byte address 0x4 - core index']
  #allocation1 [shape = 'u32[144,128]{1,0:T(1,128)}', space=vmem, size = 0x12000, scoped, tag = 'internal scratch']
  %s0 = inlined_call_operand.vmem [shape: f32[2,288,136], index: 0, kind: input, shape index: {}]
  %s1 = inlined_call_operand.vmem [shape: f32[16,288], index: 1, kind: input, shape index: {}]
  %s2 = inlined_call_operand.vmem [shape: f32[16,1], index: 2, kind: input, shape index: {}]
  %s3 = inlined_call_operand.hbm [shape: f32[2,16,136], index: 3, kind: output, shape index: {}]
  %s4 = sld [smem:[#allocation0]]
  $region45: #{tpu_custom_call.1} parent=0
    _
  %s6 = ssub.s32 1, %s4
  %s7 = scalar_select 0, %s6, %s4
  $region1: #{tpu_custom_call.1} parent=0
    #allocation2 [shape = 'u8[32768]{0}', space=vmem, size = 0x8000, scoped, tag = 'output window, operand 0']
    #allocation3 [shape = 's32[2]{0}', space=sflag, size = 0x8, scoped, tag = 'scoped memory for tpu_custom_call.1']
    %8 = vsyncpa [#allocation3], 0
    %s9 = scalar_lea.sflag [#allocation3], 1
    %10 = vsyncpa %s9, 0
    loop: start=0, step=1, limit=4
    $region2: #{tpu_custom_call.1} parent=1 // loop_pre_header
      _
    $region3: #{tpu_custom_call.1} parent=1 // loop_header
      %s12 = sphi 0, %s16
      %p13 = scmp.ge.s32.totalorder %s12, 4
      %s22 = sphi 0, %s24
      %s25 = sphi 0, %s22
      %s26 = sphi 0, %s25
      %s42 = sphi 0, %s26
      %s46 = sphi 0, %s46
      %s48 = sphi 0, %s46
      %s49 = sphi 0, %s48
      %s63 = sphi 0, %s49
      %s67 = sphi 0, %s67
      %s69 = sphi 0, %s67
      %s70 = sphi 0, %s69
      %s84 = sphi 0, %s70
      %s90 = sphi 0, %s92
      %s93 = sphi 0, %s90
      %s94 = sphi 0, %s93
      %s110 = sphi 0, %s94
    $region4: #{tpu_custom_call.1} parent=1 // loop_header_branch
      %15 = sbr.rel (%p13) target = $region8
    $region5: #{tpu_custom_call.1} parent=1 // loop_body
      %s17 = ssub.s32 %s12, 1
      %s18 = ssub.s32 %s12, 2
      %s19 = sadd.s32 %s12, 1
      %s20 = ssub.s32 %s12, %s19
      %p21 = scmp.eq.s32.totalorder %s20, 0
      %s23 = sadd.s32 %s22, 1
      %s24 = scalar_select %p21, %s22, %s23
      %p27 = pneg %p21
      %p28 = scmp.eq.s32.totalorder %s12, 1
      %p29 = por %p27, %p28
      %p30 = scmp.ne.s32.totalorder %s22, %s25
      %p31 = scmp.eq.s32.totalorder %s12, 0
      %p32 = por %p30, %p31
      %p33 = scmp.ne.s32.totalorder %s22, %s25
      %p34 = scmp.eq.s32.totalorder %s17, 1
      %p35 = por %p33, %p34
      %p36 = scmp.ne.s32.totalorder %s25, %s26
      %p37 = scmp.eq.s32.totalorder %s17, 0
      %p38 = por %p36, %p37
      %p39 = scmp.ne.s32.totalorder %s25, %s26
      %p40 = scmp.eq.s32.totalorder %s18, 1
      %p41 = por %p39, %p40
      %p43 = scmp.ne.s32.totalorder %s26, %s42
      %p44 = scmp.eq.s32.totalorder %s18, 0
      %p45 = por %p43, %p44
      %s47 = sadd.s32 %s46, 1
      %p50 = scmp.eq.s32.totalorder %s12, 1
      %p51 = scmp.ne.s32.totalorder %s46, %s48
      %p52 = scmp.eq.s32.totalorder %s12, 0
      %p53 = por %p51, %p52
      %p54 = scmp.ne.s32.totalorder %s46, %s48
      %p55 = scmp.eq.s32.totalorder %s17, 1
      %p56 = por %p54, %p55
      %p57 = scmp.ne.s32.totalorder %s48, %s49
      %p58 = scmp.eq.s32.totalorder %s17, 0
      %p59 = por %p57, %p58
      %p60 = scmp.ne.s32.totalorder %s48, %s49
      %p61 = scmp.eq.s32.totalorder %s18, 1
      %p62 = por %p60, %p61
      %p64 = scmp.ne.s32.totalorder %s49, %s63
      %p65 = scmp.eq.s32.totalorder %s18, 0
      %p66 = por %p64, %p65
      %s68 = sadd.s32 %s67, 1
      %p71 = scmp.eq.s32.totalorder %s12, 1
      %p72 = scmp.ne.s32.totalorder %s67, %s69
      %p73 = scmp.eq.s32.totalorder %s12, 0
      %p74 = por %p72, %p73
      %p75 = scmp.ne.s32.totalorder %s67, %s69
      %p76 = scmp.eq.s32.totalorder %s17, 1
      %p77 = por %p75, %p76
      %p78 = scmp.ne.s32.totalorder %s69, %s70
      %p79 = scmp.eq.s32.totalorder %s17, 0
      %p80 = por %p78, %p79
      %p81 = scmp.ne.s32.totalorder %s69, %s70
      %p82 = scmp.eq.s32.totalorder %s18, 1
      %p83 = por %p81, %p82
      %p85 = scmp.ne.s32.totalorder %s70, %s84
      %p86 = scmp.eq.s32.totalorder %s18, 0
      %p87 = por %p85, %p86
      %s88 = ssub.s32 %s12, %s19
      %p89 = scmp.eq.s32.totalorder %s88, 0
      %s91 = sadd.s32 %s90, 1
      %s92 = scalar_select %p89, %s90, %s91
      %p95 = pneg %p89
      %p96 = scmp.eq.s32.totalorder %s12, 1
      %p97 = por %p95, %p96
      %p98 = scmp.ne.s32.totalorder %s90, %s93
      %p99 = scmp.eq.s32.totalorder %s12, 0
      %p100 = por %p98, %p99
      %p101 = scmp.ne.s32.totalorder %s90, %s93
      %p102 = scmp.eq.s32.totalorder %s17, 1
      %p103 = por %p101, %p102
      %p104 = scmp.ne.s32.totalorder %s93, %s94
      %p105 = scmp.eq.s32.totalorder %s17, 0
      %p106 = por %p104, %p105
      %p107 = scmp.ne.s32.totalorder %s93, %s94
      %p108 = scmp.eq.s32.totalorder %s18, 1
      %p109 = por %p107, %p108
      %p111 = scmp.ne.s32.totalorder %s94, %s110
      %p112 = scmp.eq.s32.totalorder %s18, 0
      %p113 = por %p111, %p112
      %p114 = scmp.le.s32.totalorder 1, %s12
      %p115 = scmp.lt.s32.totalorder %s12, 3
      %p116 = pnand %p114, %p115
      %p117 = pneg %p116
      // Predicated region
      $region9: #{tpu_custom_call.1} parent=5 // pred_check
        _
      $region10: #{tpu_custom_call.1} parent=5 // pred_check_branch
        %119 = sbr.rel (%p116) target = $region12
      $region11: #{tpu_custom_call.1} parent=5 // pred_region
        %s120 = ssub.s32 %s12, 1
        // Predicated region
        $region13: #{tpu_custom_call.1} parent=11 // pred_check
          %p121 = pneg %p59
        $region14: #{tpu_custom_call.1} parent=11 // pred_check_branch
          %123 = sbr.rel (%p121) target = $region16
        $region15: #{tpu_custom_call.1} parent=11 // pred_region
          _
        $region16: #{tpu_custom_call.1} parent=11 // pred_fallthru
          _
        // Predicated region
        $region17: #{tpu_custom_call.1} parent=11 // pred_check
          %p124 = pneg %p80
        $region18: #{tpu_custom_call.1} parent=11 // pred_check_branch
          %126 = sbr.rel (%p124) target = $region20
        $region19: #{tpu_custom_call.1} parent=11 // pred_region
          _
        $region20: #{tpu_custom_call.1} parent=11 // pred_fallthru
          _
      $region12: #{tpu_custom_call.1} parent=5 // pred_fallthru
        _
      %p127 = scmp.lt.s32.totalorder %s12, 2
      // Predicated region
      $region21: #{tpu_custom_call.1} parent=5 // pred_check
        %p128 = pneg %p127
      $region22: #{tpu_custom_call.1} parent=5 // pred_check_branch
        %130 = sbr.rel (%p128) target = $region24
      $region23: #{tpu_custom_call.1} parent=5 // pred_region
        // Predicated region
        $region25: #{tpu_custom_call.1} parent=23 // pred_check
          %p131 = pneg %p32
        $region26: #{tpu_custom_call.1} parent=23 // pred_check_branch
          %133 = sbr.rel (%p131) target = $region28
        $region27: #{tpu_custom_call.1} parent=23 // pred_region
          %p134 = scmp.lt.s32.totalorder %s12, 1
          %s135 = scalar_select %p134, %s12, 1
          %s136 = smul.addr %s135, 72
          %s137 = smul.addr %s136, 8
          %s138 = scalar_lea.vmem %s0, %s137
        $region28: #{tpu_custom_call.1} parent=23 // pred_fallthru
          _
      $region24: #{tpu_custom_call.1} parent=5 // pred_fallthru
        _
      %p139 = scmp.le.s32.totalorder 1, %s12
      %p140 = scmp.lt.s32.totalorder %s12, 3
      %p141 = pnand %p139, %p140
      %p142 = pneg %p141
      // Predicated region
      $region29: #{tpu_custom_call.1} parent=5 // pred_check
        _
      $region30: #{tpu_custom_call.1} parent=5 // pred_check_branch
        %144 = sbr.rel (%p141) target = $region32
      $region31: #{tpu_custom_call.1} parent=5 // pred_region
        %s145 = ssub.s32 %s12, 1
        %p146 = scmp.lt.s32.totalorder %s17, 1
        %s147 = scalar_select %p146, %s17, 1
        %s148 = smul.addr %s147, 72
        %s149 = smul.addr %s148, 8
        %s150 = scalar_lea.vmem %s0, %s149
        %p151 = pneg %p38
        %p152 = pneg %p35
        %p153 = pneg %p59
        %p154 = pneg %p56
        %p155 = pneg %p80
        %p156 = pneg %p77
        %p157 = pneg %p106
        %p158 = pneg %p103
        %s159 = sand.u32 %s93, 1
        %s160 = scalar_lea.sflag [#allocation3], %s159
        %s161 = sand.u32 %s93, 1
        %s162 = smul.addr %s161, 32
        %s163 = scalar_lea.vmem [#allocation2], %s162
        %p164 = scmp.lt.s32.totalorder %s17, 1
        %s165 = scalar_select %p164, %s17, 1
        %s166 = smul.addr %s165, 72
        %s167 = smul.addr %s166, 8
        %s168 = scalar_lea.vmem %s0, %s167
        %v169 = vld [vmem:[%s1] sm:$0xff]
        %v170 = vld [vmem:[%s1 + $0x8] sm:$0xff]
        %v171 = vld [vmem:[%s1 + $0x10] sm:$0xff]
        %v172 = vld [vmem:[%s1 + $0x18] sm:$0xff]
        %v173 = vld [vmem:[%s1 + $0x20] sm:$0xff]
        %v174 = vld [vmem:[%s1 + $0x28] sm:$0xff]
        %v175 = vld [vmem:[%s168] sm:$0xff]
        %v176 = vld [vmem:[%s168 + $0x8] sm:$0xff]
        %v177 = vld [vmem:[%s168 + $0x10] sm:$0xff]
        %v178 = vld [vmem:[%s168 + $0x18] sm:$0xff]
        %v179 = vld [vmem:[%s168 + $0x20] sm:$0xff]
        %v180 = vld [vmem:[%s168 + $0x28] sm:$0xff]
        %v181 = vld [vmem:[%s168 + $0x30] sm:$0xff]
        %v182 = vld [vmem:[%s168 + $0x38] sm:$0xff]
        %v183 = vld [vmem:[%s168 + $0x40] sm:$0xff]
        %v184 = vld [vmem:[%s168 + $0x48] sm:$0xff]
        %v185 = vld [vmem:[%s168 + $0x50] sm:$0xff]
        %v186 = vld [vmem:[%s168 + $0x58] sm:$0xff]
        %v187 = vld [vmem:[%s168 + $0x60] sm:$0xff]
        %v188 = vld [vmem:[%s168 + $0x68] sm:$0xff]
        %v189 = vld [vmem:[%s168 + $0x70] sm:$0xff]
        %v190 = vld [vmem:[%s168 + $0x78] sm:$0xff]
        %v191 = vld [vmem:[%s168 + $0x80] sm:$0xff]
        %v192 = vld [vmem:[%s168 + $0x88] sm:$0xff]
        %v193 = vld [vmem:[%s168 + $0x90] sm:$0xff]
        %v194 = vld [vmem:[%s168 + $0x98] sm:$0xff]
        %v195 = vld [vmem:[%s168 + $0xa0] sm:$0xff]
        %v196 = vld [vmem:[%s168 + $0xa8] sm:$0xff]
        %v197 = vld [vmem:[%s168 + $0xb0] sm:$0xff]
        %v198 = vld [vmem:[%s168 + $0xb8] sm:$0xff]
        %v199 = vld [vmem:[%s168 + $0xc0] sm:$0xff]
        %v200 = vld [vmem:[%s168 + $0xc8] sm:$0xff]
        %v201 = vld [vmem:[%s168 + $0xd0] sm:$0xff]
        %v202 = vld [vmem:[%s168 + $0xd8] sm:$0xff]
        %v203 = vld [vmem:[%s168 + $0xe0] sm:$0xff]
        %v204 = vld [vmem:[%s168 + $0xe8] sm:$0xff]
        %v205 = vld [vmem:[%s168 + $0xf0] sm:$0xff]
        %v206 = vld [vmem:[%s168 + $0xf8] sm:$0xff]
        %v207 = vld [vmem:[%s168 + $0x100] sm:$0xff]
        %v208 = vld [vmem:[%s168 + $0x108] sm:$0xff]
        %v209 = vld [vmem:[%s168 + $0x110] sm:$0xff]
        %v210 = vld [vmem:[%s168 + $0x118] sm:$0xff]
        %v211 = vld [vmem:[%s168 + $0x120] sm:$0xff]
        %v212 = vld [vmem:[%s168 + $0x128] sm:$0xff]
        %v213 = vld [vmem:[%s168 + $0x130] sm:$0xff]
        %v214 = vld [vmem:[%s168 + $0x138] sm:$0xff]
        %v215 = vld [vmem:[%s168 + $0x140] sm:$0xff]
        %v216 = vld [vmem:[%s168 + $0x148] sm:$0xff]
        %v217 = vld [vmem:[%s168 + $0x150] sm:$0xff]
        %v218 = vld [vmem:[%s168 + $0x158] sm:$0xff]
        %v219 = vld [vmem:[%s168 + $0x160] sm:$0xff]
        %v220 = vld [vmem:[%s168 + $0x168] sm:$0xff]
        %v221 = vld [vmem:[%s168 + $0x170] sm:$0xff]
        %v222 = vld [vmem:[%s168 + $0x178] sm:$0xff]
        %v223 = vld [vmem:[%s168 + $0x180] sm:$0xff]
        %v224 = vld [vmem:[%s168 + $0x188] sm:$0xff]
        %v225 = vld [vmem:[%s168 + $0x190] sm:$0xff]
        %v226 = vld [vmem:[%s168 + $0x198] sm:$0xff]
        %v227 = vld [vmem:[%s168 + $0x1a0] sm:$0xff]
        %v228 = vld [vmem:[%s168 + $0x1a8] sm:$0xff]
        %v229 = vld [vmem:[%s168 + $0x1b0] sm:$0xff]
        %v230 = vld [vmem:[%s168 + $0x1b8] sm:$0xff]
        %v231 = vld [vmem:[%s168 + $0x1c0] sm:$0xff]
        %v232 = vld [vmem:[%s168 + $0x1c8] sm:$0xff]
        %v233 = vld [vmem:[%s168 + $0x1d0] sm:$0xff]
        %v234 = vld [vmem:[%s168 + $0x1d8] sm:$0xff]
        %v235 = vld [vmem:[%s168 + $0x1e0] sm:$0xff]
        %v236 = vld [vmem:[%s168 + $0x1e8] sm:$0xff]
        %v237 = vld [vmem:[%s168 + $0x1f0] sm:$0xff]
        %v238 = vld [vmem:[%s168 + $0x1f8] sm:$0xff]
        %v239 = vld [vmem:[%s168 + $0x200] sm:$0xff]
        %v240 = vld [vmem:[%s168 + $0x208] sm:$0xff]
        %v241 = vld [vmem:[%s168 + $0x210] sm:$0xff]
        %v242 = vld [vmem:[%s168 + $0x218] sm:$0xff]
        %v243 = vld [vmem:[%s168 + $0x220] sm:$0xff]
        %v244 = vld [vmem:[%s168 + $0x228] sm:$0xff]
        %v245 = vld [vmem:[%s168 + $0x230] sm:$0xff]
        %v246 = vld [vmem:[%s168 + $0x238] sm:$0xff]
        %v247 = vld [vmem:[%s2] sm:$0xff]
        %v248 = vld [vmem:[%s2 + $0x8] sm:$0xff]
        %250 = vset.pattern.permute.xlu0 0
        %251 = vperm.xlu0 %250, %v247
        %v252 = vpop.permute.xlu0 %251
        %255 = vset.pattern.permute.xlu0 0
        %256 = vperm.xlu0 %255, %v248
        %v257 = vpop.permute.xlu0 %256
        %vm259 = vcmask 261120
        %v261 = vsel %vm259, %v171, 0
        %v264 = vsel %vm259, %v174, 0
        %266 = vmatprep.subr.mxu0 %v176
        %267 = vmatpush1.msra.mxu0 %v175
        %268 = vmatprep.subr.mxu0 %v178
        %269 = vmatpush1.msra.mxu0 %v177
        %270 = vmatprep.subr.mxu0 %v180
        %271 = vmatpush1.msra.mxu0 %v179
        %272 = vmatprep.subr.mxu0 %v182
        %273 = vmatpush1.msra.mxu0 %v181
        %274 = vmatprep.subr.mxu0 %v184
        %275 = vmatpush1.msra.mxu0 %v183
        %276 = vmatprep.subr.mxu0 %v186
        %277 = vmatpush1.msra.mxu0 %v185
        %278 = vmatprep.subr.mxu0 %v188
        %279 = vmatpush1.msra.mxu0 %v187
        %280 = vmatprep.subr.mxu0 %v190
        %281 = vmatpush1.msra.mxu0 %v189
        %282 = vmatprep.subr.mxu0 %v192
        %283 = vmatpush1.msra.mxu0 %v191
        %284 = vmatprep.subr.mxu0 %v194
        %285 = vmatpush1.msra.mxu0 %v193
        %286 = vmatprep.subr.mxu0 %v196
        %287 = vmatpush1.msra.mxu0 %v195
        %288 = vmatprep.subr.mxu0 %v198
        %289 = vmatpush1.msra.mxu0 %v197
        %290 = vmatprep.subr.mxu0 %v200
        %291 = vmatpush1.msra.mxu0 %v199
        %292 = vmatprep.subr.mxu0 %v202
        %293 = vmatpush1.msra.mxu0 %v201
        %294 = vmatprep.subr.mxu0 %v204
        %295 = vmatpush1.msra.mxu0 %v203
        %296 = vmatprep.subr.mxu0 %v206
        %297 = vmatpush1.msra.mxu0 %v205
        %298 = vmatprep.subr.mxu0 %v208
        %299 = vmatpush1.msra.mxu0 %v207
        %300 = vmatprep.subr.mxu0 %v210
        %301 = vmatpush1.msra.mxu0 %v209
        %302 = vmatprep.subr.mxu0 %v212
        %303 = vmatpush1.msra.mxu0 %v211
        %304 = vmatprep.subr.mxu0 %v214
        %305 = vmatpush1.msra.mxu0 %v213
        %306 = vmatprep.subr.mxu0 %v216
        %307 = vmatpush1.msra.mxu0 %v215
        %308 = vmatprep.subr.mxu0 %v218
        %309 = vmatpush1.msra.mxu0 %v217
        %310 = vmatprep.subr.mxu0 %v220
        %311 = vmatpush1.msra.mxu0 %v219
        %312 = vmatprep.subr.mxu0 %v222
        %313 = vmatpush1.msra.mxu0 %v221
        %314 = vmatprep.subr.mxu0 %v224
        %315 = vmatpush1.msra.mxu0 %v223
        %316 = vmatprep.subr.mxu0 %v226
        %317 = vmatpush1.msra.mxu0 %v225
        %318 = vmatprep.subr.mxu0 %v228
        %319 = vmatpush1.msra.mxu0 %v227
        %320 = vmatprep.subr.mxu0 %v230
        %321 = vmatpush1.msra.mxu0 %v229
        %322 = vmatprep.subr.mxu0 %v232
        %323 = vmatpush1.msra.mxu0 %v231
        %324 = vmatprep.subr.mxu0 %v234
        %325 = vmatpush1.msra.mxu0 %v233
        %326 = vmatprep.subr.mxu0 %v236
        %327 = vmatpush1.msra.mxu0 %v235
        %328 = vmatprep.subr.mxu0 %v238
        %329 = vmatpush1.msra.mxu0 %v237
        %330 = vmatprep.mubr.f32.mxu0 %v170
        %331 = vmatmul.mubr.f32.gmra.mrb[0].mxu0 %v169
        %v332 = vpop.f32.mrb[0].mxu0
        %v333 = vadd.f32 %v252, %v332
        %v334 = vpop.f32.mrb[0].mxu0
        %v335 = vadd.f32 %v252, %v334
        %336 = vmatprep.mubr.f32.mxu0 %v173
        %337 = vmatmul.mubr.f32.gmra.mrb[0].mxu0 %v172
        %v338 = vpop.f32.mrb[0].mxu0
        %v339 = vadd.f32 %v257, %v338
        %v340 = vpop.f32.mrb[0].mxu0
        %v341 = vadd.f32 %v257, %v340
        %342 = vdwg.mxu0
        %343 = vmatprep.subr.mxu0 %v240
        %344 = vmatpush1.msra.mxu0 %v239
        %345 = vmatprep.subr.mxu0 %v242
        %346 = vmatpush1.msra.mxu0 %v241
        %347 = vmatprep.subr.mxu0 %v244
        %348 = vmatpush1.msra.mxu0 %v243
        %349 = vmatprep.subr.mxu0 %v246
        %350 = vmatpush1.msra.mxu0 %v245
        %351 = vmatprep.subr.mxu0 0.0
        %352 = vmatpush1.msra.mxu0 0.0
        %353 = vmatprep.subr.mxu0 0.0
        %354 = vmatpush1.msra.mxu0 0.0
        %355 = vmatprep.subr.mxu0 0.0
        %356 = vmatpush1.msra.mxu0 0.0
        %357 = vmatprep.subr.mxu0 0.0
        %358 = vmatpush1.msra.mxu0 0.0
        %359 = vmatprep.subr.mxu0 0.0
        %360 = vmatpush1.msra.mxu0 0.0
        %361 = vmatprep.subr.mxu0 0.0
        %362 = vmatpush1.msra.mxu0 0.0
        %363 = vmatprep.subr.mxu0 0.0
        %364 = vmatpush1.msra.mxu0 0.0
        %365 = vmatprep.subr.mxu0 0.0
        %366 = vmatpush1.msra.mxu0 0.0
        %367 = vmatprep.subr.mxu0 0.0
        %368 = vmatpush1.msra.mxu0 0.0
        %369 = vmatprep.subr.mxu0 0.0
        %370 = vmatpush1.msra.mxu0 0.0
        %371 = vmatprep.subr.mxu0 0.0
        %372 = vmatpush1.msra.mxu0 0.0
        %373 = vmatprep.subr.mxu0 0.0
        %374 = vmatpush1.msra.mxu0 0.0
        %375 = vmatprep.subr.mxu0 0.0
        %376 = vmatpush1.msra.mxu0 0.0
        %377 = vmatprep.subr.mxu0 0.0
        %378 = vmatpush1.msra.mxu0 0.0
        %379 = vmatprep.subr.mxu0 0.0
        %380 = vmatpush1.msra.mxu0 0.0
        %381 = vmatprep.subr.mxu0 0.0
        %382 = vmatpush1.msra.mxu0 0.0
        %383 = vmatprep.subr.mxu0 0.0
        %384 = vmatpush1.msra.mxu0 0.0
        %385 = vmatprep.subr.mxu0 0.0
        %386 = vmatpush1.msra.mxu0 0.0
        %387 = vmatprep.subr.mxu0 0.0
        %388 = vmatpush1.msra.mxu0 0.0
        %389 = vmatprep.subr.mxu0 0.0
        %390 = vmatpush1.msra.mxu0 0.0
        %391 = vmatprep.subr.mxu0 0.0
        %392 = vmatpush1.msra.mxu0 0.0
        %393 = vmatprep.subr.mxu0 0.0
        %394 = vmatpush1.msra.mxu0 0.0
        %395 = vmatprep.subr.mxu0 0.0
        %396 = vmatpush1.msra.mxu0 0.0
        %397 = vmatprep.subr.mxu0 0.0
        %398 = vmatpush1.msra.mxu0 0.0
        %399 = vmatprep.subr.mxu0 0.0
        %400 = vmatpush1.msra.mxu0 0.0
        %401 = vmatprep.subr.mxu0 0.0
        %402 = vmatpush1.msra.mxu0 0.0
        %403 = vmatprep.subr.mxu0 0.0
        %404 = vmatpush1.msra.mxu0 0.0
        %405 = vmatprep.subr.mxu0 0.0
        %406 = vmatpush1.msra.mxu0 0.0
        %407 = vmatprep.mubr.f32.mxu0 0.0
        %408 = vmatmul.mubr.f32.gmra.mrb[0].mxu0 %v261
        %v409 = vpop.f32.mrb[0].mxu0
        %v410 = vadd.f32 %v333, %v409
        %v411 = vpop.f32.mrb[0].mxu0
        %v412 = vadd.f32 %v335, %v411
        %413 = vmatprep.mubr.f32.mxu0 0.0
        %414 = vmatmul.mubr.f32.gmra.mrb[0].mxu0 %v264
        %v415 = vpop.f32.mrb[0].mxu0
        %v416 = vadd.f32 %v339, %v415
        %v417 = vpop.f32.mrb[0].mxu0
        %v418 = vadd.f32 %v341, %v417
        %419 = vdwg.mxu0
        %vm420 = vcmp.gt.f32.partialorder %v410, 0.0
        %vm421 = vcmp.gt.f32.partialorder %v412, 0.0
        %vm422 = vcmp.gt.f32.partialorder %v416, 0.0
        %vm423 = vcmp.gt.f32.partialorder %v418, 0.0
        %v424 = vmin.f32 %v410, 0.0
        %v425 = vmin.f32 %v412, 0.0
        %v426 = vmin.f32 %v416, 0.0
        %v427 = vmin.f32 %v418, 0.0
        %v428 = vmul.f32 %v424, 1.442695
        %v429 = vpow.pop %v428
        %v430 = vmul.f32 %v425, 1.442695
        %v431 = vpow.pop %v430
        %v432 = vmul.f32 %v426, 1.442695
        %v433 = vpow.pop %v432
        %v434 = vmul.f32 %v427, 1.442695
        %v435 = vpow.pop %v434
        %v436 = vsub.f32 %v429, 1.0
        %v437 = vsub.f32 %v431, 1.0
        %v438 = vsub.f32 %v433, 1.0
        %v439 = vsub.f32 %v435, 1.0
        %v440 = vsel %vm420, %v410, %v436
        %v441 = vsel %vm421, %v412, %v437
        %v442 = vsel %vm422, %v416, %v438
        %v443 = vsel %vm423, %v418, %v439
        %vm444 = vcmask 64512
        %v445 = vsel %vm444, %v441, 0.0
        %v446 = vadd.f32 %v440, %v445
        %447 = vadd.xlane.f32.xlu0 %v446
        %v448 = vpop.xlane.xlu0 %447
        %v449 = vsel %vm444, %v443, 0.0
        %v450 = vadd.f32 %v442, %v449
        %451 = vadd.xlane.f32.xlu0 %v450
        %v452 = vpop.xlane.xlu0 %451
        %v453 = vrcp.pop 136.0
        %v454 = vmul.f32 %v448, %v453
        %v455 = vmul.f32 %v452, %v453
        %v456 = vsub.f32 %v440, %v454
        %v457 = vsub.f32 %v441, %v454
        %v458 = vsub.f32 %v442, %v455
        %v459 = vsub.f32 %v443, %v455
        %v460 = vmul.f32 %v456, %v456
        %v461 = vmul.f32 %v457, %v457
        %v462 = vmul.f32 %v458, %v458
        %v463 = vmul.f32 %v459, %v459
        %v464 = vsel %vm444, %v461, 0.0
        %v465 = vadd.f32 %v460, %v464
        %466 = vadd.xlane.f32.xlu0 %v465
        %v467 = vpop.xlane.xlu0 %466
        %v468 = vsel %vm444, %v463, 0.0
        %v469 = vadd.f32 %v462, %v468
        %470 = vadd.xlane.f32.xlu0 %v469
        %v471 = vpop.xlane.xlu0 %470
        %v472 = vmul.f32 %v467, %v453
        %v473 = vmul.f32 %v471, %v453
        %v474 = vadd.f32 %v472, 1e-05
        %v475 = vadd.f32 %v473, 1e-05
        %v476 = vrsqrt.pop %v474
        %v477 = vrsqrt.pop %v475
        %v478 = vmul.f32 %v456, %v476
        %v479 = vmul.f32 %v457, %v476
        %v480 = vmul.f32 %v458, %v477
        %v481 = vmul.f32 %v459, %v477
        %482 = vst [vmem:[%s163] sm:$0xff] %v478
        %483 = vst.msk [vmem:[%s163 + $0x8] sm:$0xff] %vm444, %v479
        %484 = vst [vmem:[%s163 + $0x10] sm:$0xff] %v480
        %485 = vst.msk [vmem:[%s163 + $0x18] sm:$0xff] %vm444, %v481
        %s486 = sand.u32 %s93, 1
        %s487 = scalar_lea.sflag [#allocation3], %s486
        %s488 = sand.u32 %s93, 1
        %s489 = smul.addr %s488, 32
        %s490 = scalar_lea.vmem [#allocation2], %s489
        // Predicated region
        $region33: #{tpu_custom_call.1} parent=31 // pred_check
          %p491 = pneg %p103
        $region34: #{tpu_custom_call.1} parent=31 // pred_check_branch
          %493 = sbr.rel (%p491) target = $region36
        $region35: #{tpu_custom_call.1} parent=31 // pred_region
          %s495 = ssub.s32 512, 512
          %496 = vsyncadd %s487, %s495
          %s497 = smul.addr %s17, 4
          %s498 = smul.addr %s497, 128
          %s499 = scalar_lea.hbm %s3, %s498
          %s500 = sshll.u32 %s490, 4
          %s501 = int_to_ptr.vmem [resolvable:$true] %s500
          %506 = dma.vmem_to_hbm [thread:$0]  %s501, 512, %s499, %s487, 256, 256, 16
        $region36: #{tpu_custom_call.1} parent=31 // pred_fallthru
          _
      $region32: #{tpu_custom_call.1} parent=5 // pred_fallthru
        _
      %p507 = scmp.le.s32.totalorder 2, %s12
      // Predicated region
      $region37: #{tpu_custom_call.1} parent=5 // pred_check
        %p508 = pneg %p507
      $region38: #{tpu_custom_call.1} parent=5 // pred_check_branch
        %510 = sbr.rel (%p508) target = $region40
      $region39: #{tpu_custom_call.1} parent=5 // pred_region
        %s511 = ssub.s32 %s12, 2
        // Predicated region
        $region41: #{tpu_custom_call.1} parent=39 // pred_check
          %p512 = pneg %p109
        $region42: #{tpu_custom_call.1} parent=39 // pred_check_branch
          %514 = sbr.rel (%p512) target = $region44
        $region43: #{tpu_custom_call.1} parent=39 // pred_region
          %s515 = sand.u32 %s94, 1
          %s516 = scalar_lea.sflag [#allocation3], %s515
          %s517 = sand.u32 %s94, 1
          %s518 = smul.addr %s517, 32
          %s519 = scalar_lea.vmem [#allocation2], %s518
          %520 = dma.done %s516, 512
        $region44: #{tpu_custom_call.1} parent=39 // pred_fallthru
          _
      $region40: #{tpu_custom_call.1} parent=5 // pred_fallthru
        _
    $region6: #{tpu_custom_call.1} parent=1 // loop_footer
      %s16 = sadd.s32 1, %s12
    $region7: #{tpu_custom_call.1} parent=1 // loop_footer_branch
      %11 = sbr.rel target = $region3
    $region8: #{tpu_custom_call.1} parent=1 // loop_exit
      _
    %521 = vsyncpa [#allocation3], 1
    %s522 = scalar_lea.sflag [#allocation3], 1
    %523 = vsyncpa %s522, 1

</llo_original>
